<compile_context>
chip_gen: v5e
topology: v5e:2x2
jax: 0.10.0
libtpu: 0.0.40
codegen_flags: <defaults>
</compile_context>

<pallas_src>
import functools

import jax
import jax.numpy as jnp
from jax.experimental import pallas as pl
from jax.experimental.pallas import tpu as pltpu


def _round_up(x, m):
    return ((x + m - 1) // m) * m


# --------------------------------------------------------------------------
# Kernels
# --------------------------------------------------------------------------
def _linear_kernel(x_ref, w_ref, b_ref, o_ref):
    """out = x @ W + b. Matmul in bf16 on the MXU, f32 accumulate, f32 epilogue."""
    acc = jnp.dot(x_ref[...], w_ref[...], preferred_element_type=jnp.float32)
    o_ref[...] = acc + b_ref[...]          # bias add kept in f32 (v5e-friendly)


def _gather_kernel(ids_ref, row_ref, o_ref):
    """Embedding row gather: the gathered table row was already DMA'd by the
    data-dependent BlockSpec index_map; just write it to the output block."""
    del ids_ref                            # ids only feed the index_map (SMEM)
    o_ref[...] = row_ref[...]


# --------------------------------------------------------------------------
# Pallas wrappers
# --------------------------------------------------------------------------
@functools.partial(jax.jit, static_argnames=("block_rows",))
def fused_linear_pallas(x, w, b, *, block_rows=256):
    """x: (N, S) bf16/f32, w: (S, M) bf16/f32, b: (1, M) f32 -> (N, M) f32.

    One pallas_call over row tiles; weight/bias are grid-invariant blocks.
    """
    N, S = x.shape
    M = w.shape[1]
    # Row tile: as large as possible up to block_rows, multiple of 16
    # (bf16 sublane packing; also a multiple of 8 for the f32 output block).
    tile = min(block_rows, _round_up(N, 16))
    n_pad = _round_up(N, tile)
    if n_pad != N:
        x = jnp.pad(x, ((0, n_pad - N), (0, 0)))
    grid = (n_pad // tile,)

    out = pl.pallas_call(
        _linear_kernel,
        out_shape=jax.ShapeDtypeStruct((n_pad, M), jnp.float32),
        grid=grid,
        in_specs=[
            pl.BlockSpec((tile, S), lambda i: (i, 0)),
            pl.BlockSpec((S, M), lambda i: (0, 0)),
            pl.BlockSpec((1, M), lambda i: (0, 0)),
        ],
        out_specs=pl.BlockSpec((tile, M), lambda i: (i, 0)),
        compiler_params=pltpu.CompilerParams(
            dimension_semantics=("parallel",)   # lets megacore shard row tiles
        ),
    )(x, w, b)
    return out[:N]


@jax.jit
def embedding_gather_pallas(relation_ids, table):
    """relation_ids: (B,) int32, table: (R, M) f32 -> (B, M) f32.

    Scalar-prefetch DMA gather: ids land in SMEM and drive the table's
    index_map, so only the B requested rows are ever moved HBM->VMEM.
    """
    B = relation_ids.shape[0]
    R, M = table.shape
    ids = relation_ids.astype(jnp.int32)
    return pl.pallas_call(
        _gather_kernel,
        out_shape=jax.ShapeDtypeStruct((B, M), jnp.float32),
        grid_spec=pltpu.PrefetchScalarGridSpec(
            num_scalar_prefetch=1,
            grid=(B,),
            in_specs=[pl.BlockSpec((1, M), lambda i, ids: (ids[i], 0))],
            out_specs=pl.BlockSpec((1, M), lambda i, ids: (i, 0)),
        ),
        compiler_params=pltpu.CompilerParams(
            dimension_semantics=("arbitrary",)
        ),
    )(ids, table)


# --------------------------------------------------------------------------
# Module
# --------------------------------------------------------------------------
class SentenceTransE:
    """JAX/Pallas version of the TransE model for sentence-based KB tuples."""

    def __init__(self, sentence_embedding_dim, num_relation, mapped_embedding_dim,
                 compute_dtype=jnp.bfloat16, key=jax.random.PRNGKey(0)):
        k_w, k_b, k_e = jax.random.split(key, 3)
        bound = 1.0 / jnp.sqrt(jnp.float32(sentence_embedding_dim))
        # nn.Linear(sentence_embedding_dim, mapped_embedding_dim),
        # stored pre-transposed: (S, M) so the kernel computes x @ W + b.
        self.sentence_w = jax.random.uniform(
            k_w, (sentence_embedding_dim, mapped_embedding_dim),
            jnp.float32, -bound, bound)
        self.sentence_b = jax.random.uniform(
            k_b, (1, mapped_embedding_dim), jnp.float32, -bound, bound)
        # nn.Embedding(num_relation, mapped_embedding_dim) (N(0,1) init)
        self.relation_embedding = jax.random.normal(
            k_e, (num_relation, mapped_embedding_dim), jnp.float32)
        self.compute_dtype = compute_dtype   # bf16 matmul operands, f32 accumulate

    def _forward_sentences(self, sentence1, sentence2):
        # Fuse both Linear calls into one matmul: (2B, S) @ (S, M) + b.
        x = jnp.concatenate([sentence1, sentence2], axis=0)
        x = x.astype(self.compute_dtype)
        w = self.sentence_w.astype(self.compute_dtype)
        out = fused_linear_pallas(x, w, self.sentence_b)
        B = sentence1.shape[0]
        return out[:B], out[B:]

    def _forward_relation(self, relation_ids):
        # relation_ids: (B,) int32 (relation_encoder output)
        return embedding_gather_pallas(relation_ids, self.relation_embedding)

    def forward(self, x):
        """x = [sentence1_encoded, relation_ids, sentence2_encoded]"""
        sentence1, relation, sentence2 = x[0], x[1], x[2]
        out_sentence1, out_sentence2 = self._forward_sentences(sentence1, sentence2)
        out_relation = self._forward_relation(relation)
        return (out_sentence1, out_relation, out_sentence2)

    __call__ = forward


# --------------------------------------------------------------------------
# Main
# --------------------------------------------------------------------------
if __name__ == "__main__":
    B = 8                       # batch of KB triples
    SENT_DIM = 128              # sentence_embedding_dim
    MAP_DIM = 128               # mapped_embedding_dim
    NUM_REL = 16                # num_relation

    key = jax.random.PRNGKey(0)
    k1, k2, k3, k_params = jax.random.split(key, 4)

    sent1_enc = jax.random.normal(k1, (B, SENT_DIM), jnp.float32)
    sent2_enc = jax.random.normal(k2, (B, SENT_DIM), jnp.float32)
    rel_ids = jax.random.randint(k3, (B,), 0, NUM_REL, jnp.int32)

    model = SentenceTransE(SENT_DIM, NUM_REL, MAP_DIM, key=k_params)

    out_s1, out_rel, out_s2 = model([sent1_enc, rel_ids, sent2_enc])
    jax.block_until_ready((out_s1, out_rel, out_s2))

    # Reference with matching bf16 operands / f32 accumulation.
    w_bf = model.sentence_w.astype(jnp.bfloat16)
    def ref_linear(x):
        return (jnp.dot(x.astype(jnp.bfloat16), w_bf,
                        preferred_element_type=jnp.float32)
                + model.sentence_b)
    ref_s1 = ref_linear(sent1_enc)
    ref_s2 = ref_linear(sent2_enc)
    ref_rel = model.relation_embedding[rel_ids]

    assert jnp.allclose(out_s1, ref_s1, atol=1e-3, rtol=1e-3)
    assert jnp.allclose(out_s2, ref_s2, atol=1e-3, rtol=1e-3)
    assert jnp.allclose(out_rel, ref_rel, atol=1e-6, rtol=1e-6)

    # Loose sanity check against full-f32 math (bf16 operand rounding only).
    ref_s1_f32 = sent1_enc @ model.sentence_w + model.sentence_b
    assert jnp.allclose(out_s1, ref_s1_f32, atol=5e-2, rtol=5e-2)

    assert out_s1.shape == (B, MAP_DIM)
    assert out_s2.shape == (B, MAP_DIM)
    assert out_rel.shape == (B, MAP_DIM)

    print("KERNEL_OK")
</pallas_src>

<mosaic_0001>
module attributes {stable_mosaic.version = 11 : i64} {
  func.func @_linear_kernel(%arg0: i32, %arg1: memref<16x128xbf16, #tpu.memory_space<vmem>>, %arg2: memref<128x128xbf16, #tpu.memory_space<vmem>>, %arg3: memref<1x128xf32, #tpu.memory_space<vmem>>, %arg4: memref<16x128xf32, #tpu.memory_space<vmem>>) attributes {dimension_semantics = [#tpu.dimension_semantics<parallel>], iteration_bounds = array<i64: 1>, scalar_prefetch = 0 : i64, scratch_operands = 0 : i64, tpu.core_type = #tpu.core_type<tc>, window_params = [{transform_indices = @transform_0, window_bounds = array<i64: 16, 128>}, {pipeline_mode = #tpu.pipeline_mode<synchronous>, transform_indices = @transform_1, window_bounds = array<i64: 128, 128>}, {pipeline_mode = #tpu.pipeline_mode<synchronous>, transform_indices = @transform_2, window_bounds = array<i64: 1, 128>}, {transform_indices = @transform_3, window_bounds = array<i64: 16, 128>}]} {
    %c0 = arith.constant 0 : index
    %c0_0 = arith.constant 0 : index
    %0 = vector.load %arg1[%c0, %c0_0] : memref<16x128xbf16, #tpu.memory_space<vmem>>, vector<16x128xbf16>
    %c0_1 = arith.constant 0 : index
    %c0_2 = arith.constant 0 : index
    %1 = vector.load %arg2[%c0_1, %c0_2] : memref<128x128xbf16, #tpu.memory_space<vmem>>, vector<128x128xbf16>
    %cst = arith.constant dense<0.000000e+00> : vector<16x128xf32>
    %2 = tpu.matmul %0, %1, %cst {dimension_numbers = #tpu.dot_dimension_numbers<[1], [0], [0], [1], [0, 0, 1, 1], [], []>} : vector<16x128xbf16>, vector<128x128xbf16>, vector<16x128xf32> -> vector<16x128xf32>
    %c0_3 = arith.constant 0 : index
    %c0_4 = arith.constant 0 : index
    %3 = vector.load %arg3[%c0_3, %c0_4] : memref<1x128xf32, #tpu.memory_space<vmem>>, vector<1x128xf32>
    %4 = vector.broadcast %3 : vector<1x128xf32> to vector<16x128xf32>
    %5 = arith.addf %2, %4 : vector<16x128xf32>
    %c0_5 = arith.constant 0 : index
    %c0_6 = arith.constant 0 : index
    %6 = vector.load %arg4[%c0_5, %c0_6] : memref<16x128xf32, #tpu.memory_space<vmem>>, vector<16x128xf32>
    tpu.vector_store %arg4[%c0_5, %c0_6], %5 {strides = array<i32>} : memref<16x128xf32, #tpu.memory_space<vmem>>, vector<16x128xf32>,
    return
  }
  func.func @transform_0(%arg0: i32) -> (i32, i32) {
    %c0_i32 = arith.constant 0 : i32
    %c0_i32_0 = arith.constant 0 : i32
    return %arg0, %c0_i32 : i32, i32
  }
  func.func @transform_1(%arg0: i32) -> (i32, i32) {
    %c0_i32 = arith.constant 0 : i32
    %c0_i32_0 = arith.constant 0 : i32
    %c0_i32_1 = arith.constant 0 : i32
    return %c0_i32, %c0_i32_0 : i32, i32
  }
  func.func @transform_2(%arg0: i32) -> (i32, i32) {
    %c0_i32 = arith.constant 0 : i32
    %c0_i32_0 = arith.constant 0 : i32
    %c0_i32_1 = arith.constant 0 : i32
    return %c0_i32, %c0_i32_0 : i32, i32
  }
  func.func @transform_3(%arg0: i32) -> (i32, i32) {
    %c0_i32 = arith.constant 0 : i32
    %c0_i32_0 = arith.constant 0 : i32
    return %arg0, %c0_i32 : i32, i32
  }
}

</mosaic_0001>

<llo_original>
// kernel: fused_linear_pallas.1
$region0: #{fused_linear_pallas.1}
  #allocation0 [shape = 'u32[]', space=smem, size = 0x4, offset = 0x4, fixed_abs, tag = 'smem constant byte address 0x4 - core index']
  #allocation1 [shape = 'u32[72,128]{1,0:T(1,128)}', space=vmem, size = 0x9000, scoped, tag = 'internal scratch']
  %s0 = inlined_call_operand.hbm [shape: bf16[16,128], index: 0, kind: input, shape index: {}]
  %s1 = inlined_call_operand.hbm [shape: bf16[128,128], index: 1, kind: input, shape index: {}]
  %s2 = inlined_call_operand.vmem [shape: f32[1,128], index: 2, kind: input, shape index: {}]
  %s3 = inlined_call_operand.hbm [shape: f32[16,128], index: 3, kind: output, shape index: {}]
  %s4 = sld [smem:[#allocation0]]
  $region30: #{fused_linear_pallas.1} parent=0
    _
  %s6 = ssub.s32 1, %s4
  %s7 = scalar_select 0, %s6, %s4
  $region1: #{fused_linear_pallas.1} parent=0
    #allocation2 [shape = 'u8[4096]{0}', space=vmem, size = 0x1000, scoped, tag = 'input window, operand 0, single buffered']
    #allocation3 [shape = 's32[1]{0}', space=sflag, size = 0x4, scoped, tag = 'scoped memory for fused_linear_pallas.1']
    #allocation4 [shape = 's32[1]{0}', space=sflag, size = 0x4, scoped, tag = 'scoped memory for fused_linear_pallas.1']
    #allocation5 [shape = 'u8[32768]{0}', space=vmem, size = 0x8000, scoped, tag = 'input window, operand 1, single buffered']
    #allocation6 [shape = 's32[1]{0}', space=sflag, size = 0x4, scoped, tag = 'scoped memory for fused_linear_pallas.1']
    #allocation7 [shape = 'u8[8192]{0}', space=vmem, size = 0x2000, scoped, tag = 'output window, operand 0, single buffered']
    %8 = vsyncpa [#allocation3], 0
    %9 = vsyncpa [#allocation6], 0
    %10 = vsyncpa [#allocation4], 0
    // Predicated region
    $region2: #{fused_linear_pallas.1} parent=1 // pred_check
      _
    $region3: #{fused_linear_pallas.1} parent=1 // pred_check_branch
      %12 = sbr.rel (0) target = $region5
    $region4: #{fused_linear_pallas.1} parent=1 // pred_region
      %14 = vsyncadd [#allocation3], 0
      %s15 = sshll.u32 %s0, 4
      %s16 = int_to_ptr.hbm [resolvable:$true] %s15
      %s17 = sshll.u32 [#allocation2], 4
      %s18 = int_to_ptr.vmem [resolvable:$true] %s17
      %23 = dma.hbm_to_vmem [thread:$0]  %s16, 128, %s18, [#allocation3], 64, 64, 4
    $region5: #{fused_linear_pallas.1} parent=1 // pred_fallthru
      _
    // Predicated region
    $region6: #{fused_linear_pallas.1} parent=1 // pred_check
      _
    $region7: #{fused_linear_pallas.1} parent=1 // pred_check_branch
      %25 = sbr.rel (0) target = $region9
    $region8: #{fused_linear_pallas.1} parent=1 // pred_region
      %27 = vsyncadd [#allocation6], 0
      %s28 = sshll.u32 %s1, 4
      %s29 = int_to_ptr.hbm [resolvable:$true] %s28
      %s30 = sshll.u32 [#allocation5], 4
      %s31 = int_to_ptr.vmem [resolvable:$true] %s30
      %36 = dma.hbm_to_vmem [thread:$0]  %s29, 1024, %s31, [#allocation6], 64, 64, 4
    $region9: #{fused_linear_pallas.1} parent=1 // pred_fallthru
      _
    // Predicated region
    $region10: #{fused_linear_pallas.1} parent=1 // pred_check
      _
    $region11: #{fused_linear_pallas.1} parent=1 // pred_check_branch
      %38 = sbr.rel (0) target = $region13
    $region12: #{fused_linear_pallas.1} parent=1 // pred_region
      _
    $region13: #{fused_linear_pallas.1} parent=1 // pred_fallthru
      _
    // Predicated region
    $region14: #{fused_linear_pallas.1} parent=1 // pred_check
      _
    $region15: #{fused_linear_pallas.1} parent=1 // pred_check_branch
      %40 = sbr.rel (0) target = $region17
    $region16: #{fused_linear_pallas.1} parent=1 // pred_region
      %42 = dma.done [#allocation3], 128
    $region17: #{fused_linear_pallas.1} parent=1 // pred_fallthru
      _
    // Predicated region
    $region18: #{fused_linear_pallas.1} parent=1 // pred_check
      _
    $region19: #{fused_linear_pallas.1} parent=1 // pred_check_branch
      %44 = sbr.rel (0) target = $region21
    $region20: #{fused_linear_pallas.1} parent=1 // pred_region
      %46 = dma.done [#allocation6], 1024
    $region21: #{fused_linear_pallas.1} parent=1 // pred_fallthru
      _
    %v47 = vld [vmem:[#allocation2] sm:$0xf]
    %v48 = vld [vmem:[#allocation2 + $0x4] sm:$0xf]
    %v49 = vld [vmem:[#allocation5] sm:$0xf]
    %v50 = vld [vmem:[#allocation5 + $0x4] sm:$0xf]
    %v51 = vld [vmem:[#allocation5 + $0x8] sm:$0xf]
    %v52 = vld [vmem:[#allocation5 + $0xc] sm:$0xf]
    %v53 = vld [vmem:[#allocation5 + $0x10] sm:$0xf]
    %v54 = vld [vmem:[#allocation5 + $0x14] sm:$0xf]
    %v55 = vld [vmem:[#allocation5 + $0x18] sm:$0xf]
    %v56 = vld [vmem:[#allocation5 + $0x1c] sm:$0xf]
    %v57 = vld [vmem:[#allocation5 + $0x20] sm:$0xf]
    %v58 = vld [vmem:[#allocation5 + $0x24] sm:$0xf]
    %v59 = vld [vmem:[#allocation5 + $0x28] sm:$0xf]
    %v60 = vld [vmem:[#allocation5 + $0x2c] sm:$0xf]
    %v61 = vld [vmem:[#allocation5 + $0x30] sm:$0xf]
    %v62 = vld [vmem:[#allocation5 + $0x34] sm:$0xf]
    %v63 = vld [vmem:[#allocation5 + $0x38] sm:$0xf]
    %v64 = vld [vmem:[#allocation5 + $0x3c] sm:$0xf]
    %v65 = vld [vmem:[%s2] sm:$0x1]
    %v67 = vperm.slane %v65, 0
    %v71 = vunpack.c.l.b16 %v47
    %v72 = vunpack.c.l.b16 %v48
    %v73 = vpack.c.b16 %v72, %v71
    %v91 = vunpack.c.l.b16 %v49
    %v92 = vunpack.c.l.b16 %v50
    %v93 = vunpack.c.l.b16 %v51
    %v94 = vunpack.c.l.b16 %v52
    %v95 = vunpack.c.l.b16 %v53
    %v96 = vunpack.c.l.b16 %v54
    %v97 = vunpack.c.l.b16 %v55
    %v98 = vunpack.c.l.b16 %v56
    %v99 = vunpack.c.l.b16 %v57
    %v100 = vunpack.c.l.b16 %v58
    %v101 = vunpack.c.l.b16 %v59
    %v102 = vunpack.c.l.b16 %v60
    %v103 = vunpack.c.l.b16 %v61
    %v104 = vunpack.c.l.b16 %v62
    %v105 = vunpack.c.l.b16 %v63
    %v106 = vunpack.c.l.b16 %v64
    %v107 = vpack.c.b16 %v92, %v91
    %v108 = vpack.c.b16 %v94, %v93
    %v109 = vpack.c.b16 %v96, %v95
    %v110 = vpack.c.b16 %v98, %v97
    %v111 = vpack.c.b16 %v100, %v99
    %v112 = vpack.c.b16 %v102, %v101
    %v113 = vpack.c.b16 %v104, %v103
    %v114 = vpack.c.b16 %v106, %v105
    %123 = vmatpush.bf16.msra.mxu0 %v114
    %124 = vmatpush.bf16.msra.mxu0 %v113
    %125 = vmatpush.bf16.msra.mxu0 %v112
    %126 = vmatpush.bf16.msra.mxu0 %v111
    %127 = vmatpush.bf16.msra.mxu0 %v110
    %128 = vmatpush.bf16.msra.mxu0 %v109
    %129 = vmatpush.bf16.msra.mxu0 %v108
    %130 = vmatpush.bf16.msra.mxu0 %v107
    %131 = vmatmul.bf16.gmra.mxu0 %v73
    %v132 = vpop.f32.mrf.mxu0
    %v133 = vadd.f32 %v67, %v132
    %v134 = vpop.f32.mrf.mxu0
    %v135 = vadd.f32 %v67, %v134
    %136 = vdwg.mxu0
    %137 = vst [vmem:[#allocation7] sm:$0xff] %v133
    %138 = vst [vmem:[#allocation7 + $0x8] sm:$0xff] %v135
    // Predicated region
    $region22: #{fused_linear_pallas.1} parent=1 // pred_check
      _
    $region23: #{fused_linear_pallas.1} parent=1 // pred_check_branch
      %140 = sbr.rel (0) target = $region25
    $region24: #{fused_linear_pallas.1} parent=1 // pred_region
      %142 = vsyncadd [#allocation4], 0
      %s143 = sshll.u32 [#allocation7], 4
      %s144 = int_to_ptr.vmem [resolvable:$true] %s143
      %s145 = sshll.u32 %s3, 4
      %s146 = int_to_ptr.hbm [resolvable:$true] %s145
      %151 = dma.vmem_to_hbm [thread:$0]  %s144, 256, %s146, [#allocation4], 128, 128, 8
    $region25: #{fused_linear_pallas.1} parent=1 // pred_fallthru
      _
    // Predicated region
    $region26: #{fused_linear_pallas.1} parent=1 // pred_check
      _
    $region27: #{fused_linear_pallas.1} parent=1 // pred_check_branch
      %153 = sbr.rel (0) target = $region29
    $region28: #{fused_linear_pallas.1} parent=1 // pred_region
      %155 = dma.done [#allocation4], 256
    $region29: #{fused_linear_pallas.1} parent=1 // pred_fallthru
      _
    %156 = vsyncpa [#allocation3], 1
    %157 = vsyncpa [#allocation6], 1
    %158 = vsyncpa [#allocation4], 1

</llo_original>
